<compile_context>
chip_gen: v5e
topology: v5e:2x2
jax: 0.10.0
libtpu: 0.0.40
codegen_flags: <defaults>
</compile_context>

<pallas_src>
import numpy as np
import jax
import jax.numpy as jnp
from jax.experimental import pallas as pl
from jax.experimental.pallas import tpu as pltpu


def _round_up(a, b):
    return (a + b - 1) // b * b


def _cdiv(a, b):
    return (a + b - 1) // b


# ----------------------------------------------------------------------------
# Wrapper-side, data-independent precompute: collapse the TT chain into the
# effective dense weight W (in_feat, out_feat).  The chain (including every
# view/permute of the reference) is applied once to an identity matrix, so
# row i of W is exactly the image of basis vector e_i -> x @ W reproduces the
# reference linear map.  In deployment this is one-time init work, like the
# TensorTrain factorization itself.
# ----------------------------------------------------------------------------
def tt_effective_weight(tt_cores, in_shapes, out_shapes, tt_ranks):
    d = len(in_shapes)
    ranks = [1] + list(tt_ranks) + [1]
    in_feat = int(np.prod(in_shapes))
    permute = [0] + list(range(2, d + 1)) + [1, d + 1]
    z = jnp.eye(in_feat, dtype=jnp.float32)
    z = z.reshape(-1, *in_shapes)
    z = jnp.transpose(z, permute[:-1])
    z = jnp.matmul(z, tt_cores[0].astype(jnp.float32),
                   precision=jax.lax.Precision.HIGHEST)
    for i in range(1, d):
        z = z.reshape(-1, *in_shapes[i:], *out_shapes[:i], ranks[i])
        z = jnp.transpose(z, permute)
        z = z.reshape(*z.shape[:-2], -1)
        z = jnp.matmul(z, tt_cores[i].astype(jnp.float32),
                       precision=jax.lax.Precision.HIGHEST)
    return z.reshape(in_feat, -1)            # (in_feat, out_feat)


# ----------------------------------------------------------------------------
# Kernel: one lane-dense MXU matmul + f32 bias add + full-width store per tile.
# ----------------------------------------------------------------------------
def _linear_bias_kernel(x_ref, w_ref, b_ref, o_ref):
    acc = jnp.dot(x_ref[...], w_ref[...], preferred_element_type=jnp.float32)
    o_ref[...] = (acc + b_ref[...]).astype(o_ref.dtype)


# ----------------------------------------------------------------------------
# Wrapper
# ----------------------------------------------------------------------------
def tt_linear_forward(x, tt_cores, bias, in_shapes, out_shapes, tt_ranks,
                      *, row_tile=256, col_tile=512):
    B, S, in_feat = x.shape
    assert in_feat == int(np.prod(in_shapes))
    out_feat = int(np.prod(out_shapes))

    # One-time, data-independent weight precompute.
    w = tt_effective_weight(tt_cores, in_shapes, out_shapes, tt_ranks)
    w = w.astype(x.dtype)   # keep MXU operands in the activation dtype
    # NOTE: for bf16 activations this rounds the TT weight to bf16 (mixed
    # precision vs. the f32 reference) -- re-validate tolerances in that mode.

    # Lane-dense padding (no-op when dims are already 128-multiples).
    in_p = _round_up(in_feat, 128)
    out_p = _round_up(out_feat, 128)
    col_tile = _round_up(max(128, min(col_tile, out_p)), 128)
    out_pp = _round_up(out_p, col_tile)

    BR = B * S
    row_tile = max(8, min(row_tile, _round_up(BR, 8)))
    row_tile = _round_up(row_tile, 8)
    # Give v7x's two TensorCores something to split when the row count is small.
    if BR > 8 and _cdiv(BR, row_tile) < 2:
        row_tile = _round_up(_cdiv(BR, 2), 8)
    BRp = _round_up(BR, row_tile)

    x2 = x.reshape(BR, in_feat)
    if (BRp, in_p) != (BR, in_feat):
        x2 = jnp.pad(x2, ((0, BRp - BR), (0, in_p - in_feat)))
    if (in_p, out_pp) != w.shape:
        w = jnp.pad(w, ((0, in_p - in_feat), (0, out_pp - out_feat)))
    bias2 = bias.astype(jnp.float32).reshape(1, out_feat)
    if out_pp != out_feat:
        bias2 = jnp.pad(bias2, ((0, 0), (0, out_pp - out_feat)))

    grid = (BRp // row_tile, out_pp // col_tile)

    # Explicit VMEM budget: double-buffered x / W-tile / out + f32 accumulator.
    # Cap kept under v7x's 64 MiB physical VMEM; shrink row_tile/col_tile if
    # the estimate ever approaches the cap.
    item = jnp.dtype(x.dtype).itemsize
    est = (2 * row_tile * in_p * item          # x tiles (double-buffered)
           + 2 * in_p * col_tile * item        # W tiles (double-buffered)
           + 2 * 8 * col_tile * 4              # bias (sublane-padded)
           + 2 * row_tile * col_tile * item    # out tiles (double-buffered)
           + row_tile * col_tile * 4)          # f32 accumulator value
    vmem_limit = int(min(max(2 * est, 8 << 20), 48 << 20))

    out = pl.pallas_call(
        _linear_bias_kernel,
        out_shape=jax.ShapeDtypeStruct((BRp, out_pp), x.dtype),
        grid_spec=pltpu.PrefetchScalarGridSpec(
            num_scalar_prefetch=0,
            grid=grid,
            in_specs=[
                pl.BlockSpec((row_tile, in_p), lambda i, j: (i, 0)),
                pl.BlockSpec((in_p, col_tile), lambda i, j: (0, j)),
                pl.BlockSpec((1, col_tile), lambda i, j: (0, j)),
            ],
            out_specs=pl.BlockSpec((row_tile, col_tile), lambda i, j: (i, j)),
        ),
        compiler_params=pltpu.CompilerParams(
            dimension_semantics=("parallel", "parallel"),
            vmem_limit_bytes=vmem_limit),
    )(x2, w, bias2)

    if (BRp, out_pp) != (BR, out_feat):
        out = out[:BR, :out_feat]
    return out.reshape(B, S, out_feat)


# ----------------------------------------------------------------------------
# Pure-JAX reference (direct transcription of TTLinear.forward / tt_mat_mul)
# ----------------------------------------------------------------------------
def tt_linear_reference(x, tt_cores, bias, in_shapes, out_shapes, tt_ranks):
    d = len(in_shapes)
    ranks = [1] + list(tt_ranks) + [1]
    B, S, _ = x.shape
    permute_shape = [0] + list(range(2, d + 1)) + [1, d + 1]
    z = x.reshape(-1, *in_shapes)
    z = jnp.transpose(z, permute_shape[:-1])
    z = jnp.matmul(z, tt_cores[0], precision=jax.lax.Precision.HIGHEST)
    for i in range(1, d):
        z = z.reshape(-1, *in_shapes[i:], *out_shapes[:i], ranks[i])
        z = jnp.transpose(z, permute_shape)
        z = z.reshape(*z.shape[:-2], -1)
        z = jnp.matmul(z, tt_cores[i], precision=jax.lax.Precision.HIGHEST)
    z = z.reshape(B, S, -1)
    return bias + z


if __name__ == "__main__":
    # TT factorization of a Linear(32 -> 32): 32 = 4*8, interior rank 2.
    in_shapes = [4, 8]
    out_shapes = [4, 8]
    tt_ranks = [2]
    ranks = [1] + tt_ranks + [1]
    B, S = 2, 64
    in_feat = int(np.prod(in_shapes))
    out_feat = int(np.prod(out_shapes))

    key = jax.random.PRNGKey(0)
    keys = jax.random.split(key, len(in_shapes) + 2)

    # Deterministic synthetic TT cores / bias (shapes as produced by the
    # TensorTrain decomposition in __init__); no checkpoint loading.
    # TODO(synk): the TensorTrain .fit() factorization itself is init-time
    # work, not forward compute, so it is not reproduced here.
    tt_cores = []
    for i in range(len(in_shapes)):
        shape = (ranks[i] * in_shapes[i], out_shapes[i] * ranks[i + 1])
        tt_cores.append(0.1 * jax.random.normal(keys[i], shape, jnp.float32))
    bias = 0.1 * jax.random.normal(keys[-2], (out_feat,), jnp.float32)
    x = jax.random.normal(keys[-1], (B, S, in_feat), jnp.float32)

    # Default tiles: the row_tile auto-shrink yields a 2-step parallel grid
    # for the 128 total rows here (exercises the pipeline / both v7x cores).
    out = tt_linear_forward(x, tt_cores, bias, in_shapes, out_shapes, tt_ranks)
    out = jax.block_until_ready(out)

    ref = tt_linear_reference(x, tt_cores, bias, in_shapes, out_shapes, tt_ranks)
    np.testing.assert_allclose(np.asarray(out), np.asarray(ref),
                               rtol=1e-3, atol=1e-3)
    print("KERNEL_OK")
</pallas_src>

<mosaic_0001>
module attributes {stable_mosaic.version = 11 : i64} {
  func.func @_linear_bias_kernel(%arg0: i32, %arg1: i32, %arg2: memref<64x128xf32, #tpu.memory_space<vmem>>, %arg3: memref<128x128xf32, #tpu.memory_space<vmem>>, %arg4: memref<1x128xf32, #tpu.memory_space<vmem>>, %arg5: memref<64x128xf32, #tpu.memory_space<vmem>>) attributes {dimension_semantics = [#tpu.dimension_semantics<parallel>, #tpu.dimension_semantics<parallel>], iteration_bounds = array<i64: 2, 1>, scalar_prefetch = 0 : i64, scratch_operands = 0 : i64, tpu.core_type = #tpu.core_type<tc>, window_params = [{transform_indices = @transform_0, window_bounds = array<i64: 64, 128>}, {transform_indices = @transform_1, window_bounds = array<i64: 128, 128>}, {transform_indices = @transform_2, window_bounds = array<i64: 1, 128>}, {transform_indices = @transform_3, window_bounds = array<i64: 64, 128>}]} {
    %c0 = arith.constant 0 : index
    %c0_0 = arith.constant 0 : index
    %0 = vector.load %arg2[%c0, %c0_0] : memref<64x128xf32, #tpu.memory_space<vmem>>, vector<64x128xf32>
    %c0_1 = arith.constant 0 : index
    %c0_2 = arith.constant 0 : index
    %1 = vector.load %arg3[%c0_1, %c0_2] : memref<128x128xf32, #tpu.memory_space<vmem>>, vector<128x128xf32>
    %cst = arith.constant dense<0.000000e+00> : vector<64x128xf32>
    %2 = tpu.matmul %0, %1, %cst {dimension_numbers = #tpu.dot_dimension_numbers<[1], [0], [0], [1], [0, 0, 1, 1], [], []>} : vector<64x128xf32>, vector<128x128xf32>, vector<64x128xf32> -> vector<64x128xf32>
    %c0_3 = arith.constant 0 : index
    %c0_4 = arith.constant 0 : index
    %3 = vector.load %arg4[%c0_3, %c0_4] : memref<1x128xf32, #tpu.memory_space<vmem>>, vector<1x128xf32>
    %4 = vector.broadcast %3 : vector<1x128xf32> to vector<64x128xf32>
    %5 = arith.addf %2, %4 : vector<64x128xf32>
    %c0_5 = arith.constant 0 : index
    %c0_6 = arith.constant 0 : index
    %6 = vector.load %arg5[%c0_5, %c0_6] : memref<64x128xf32, #tpu.memory_space<vmem>>, vector<64x128xf32>
    tpu.vector_store %arg5[%c0_5, %c0_6], %5 {strides = array<i32>} : memref<64x128xf32, #tpu.memory_space<vmem>>, vector<64x128xf32>,
    return
  }
  func.func @transform_0(%arg0: i32, %arg1: i32) -> (i32, i32) {
    %c0_i32 = arith.constant 0 : i32
    %c0_i32_0 = arith.constant 0 : i32
    return %arg0, %c0_i32 : i32, i32
  }
  func.func @transform_1(%arg0: i32, %arg1: i32) -> (i32, i32) {
    %c0_i32 = arith.constant 0 : i32
    %c0_i32_0 = arith.constant 0 : i32
    return %c0_i32, %arg1 : i32, i32
  }
  func.func @transform_2(%arg0: i32, %arg1: i32) -> (i32, i32) {
    %c0_i32 = arith.constant 0 : i32
    %c0_i32_0 = arith.constant 0 : i32
    return %c0_i32, %arg1 : i32, i32
  }
  func.func @transform_3(%arg0: i32, %arg1: i32) -> (i32, i32) {
    %c0_i32 = arith.constant 0 : i32
    return %arg0, %arg1 : i32, i32
  }
}

</mosaic_0001>

<llo_original>
// kernel: tpu_custom_call.1
$region0: #{tpu_custom_call.1}
  #allocation0 [shape = 'u32[]', space=smem, size = 0x4, offset = 0x4, fixed_abs, tag = 'smem constant byte address 0x4 - core index']
  #allocation1 [shape = 'u32[72,128]{1,0:T(1,128)}', space=vmem, size = 0x9000, scoped, tag = 'internal scratch']
  %s0 = inlined_call_operand.hbm [shape: f32[128,128], index: 0, kind: input, shape index: {}]
  %s1 = inlined_call_operand.hbm [shape: f32[128,128], index: 1, kind: input, shape index: {}]
  %s2 = inlined_call_operand.vmem [shape: f32[1,128], index: 2, kind: input, shape index: {}]
  %s3 = inlined_call_operand.hbm [shape: f32[128,128], index: 3, kind: output, shape index: {}]
  %s4 = sld [smem:[#allocation0]]
  $region53: #{tpu_custom_call.1} parent=0
    _
  %s6 = ssub.s32 1, %s4
  %s7 = scalar_select 0, %s6, %s4
  $region1: #{tpu_custom_call.1} parent=0
    #allocation2 [shape = 'u8[65536]{0}', space=vmem, size = 0x10000, scoped, tag = 'input window, operand 0']
    #allocation3 [shape = 's32[2]{0}', space=sflag, size = 0x8, scoped, tag = 'scoped memory for tpu_custom_call.1']
    #allocation4 [shape = 's32[2]{0}', space=sflag, size = 0x8, scoped, tag = 'scoped memory for tpu_custom_call.1']
    #allocation5 [shape = 'u8[65536]{0}', space=vmem, size = 0x10000, scoped, tag = 'input window, operand 1, single buffered']
    #allocation6 [shape = 's32[1]{0}', space=sflag, size = 0x4, scoped, tag = 'scoped memory for tpu_custom_call.1']
    #allocation7 [shape = 'u8[65536]{0}', space=vmem, size = 0x10000, scoped, tag = 'output window, operand 0']
    %8 = vsyncpa [#allocation3], 0
    %s9 = scalar_lea.sflag [#allocation3], 1
    %10 = vsyncpa %s9, 0
    %11 = vsyncpa [#allocation6], 0
    %12 = vsyncpa [#allocation4], 0
    %s13 = scalar_lea.sflag [#allocation4], 1
    %14 = vsyncpa %s13, 0
    loop: start=0, step=1, limit=4
    $region2: #{tpu_custom_call.1} parent=1 // loop_pre_header
      _
    $region3: #{tpu_custom_call.1} parent=1 // loop_header
      %s16 = sphi 0, %s20
      %p17 = scmp.ge.s32.totalorder %s16, 4
      %s23 = sphi 0, %s35
      %s24 = sphi 0, %s31
      %s25 = sphi 0, %s23
      %s26 = sphi 0, %s24
      %s27 = sphi 0, %s25
      %s28 = sphi 0, %s26
      %s38 = sphi 0, %s40
      %s41 = sphi 0, %s38
      %s42 = sphi 0, %s41
      %s58 = sphi 0, %s42
      %s64 = sphi 0, %s66
      %s67 = sphi 0, %s64
      %s68 = sphi 0, %s67
      %s84 = sphi 0, %s68
      %s90 = sphi 0, %s92
      %s93 = sphi 0, %s90
      %s94 = sphi 0, %s93
      %s110 = sphi 0, %s94
      %s118 = sphi 0, %s120
      %s121 = sphi 0, %s118
      %s122 = sphi 0, %s121
      %s138 = sphi 0, %s122
    $region4: #{tpu_custom_call.1} parent=1 // loop_header_branch
      %19 = sbr.rel (%p17) target = $region8
    $region5: #{tpu_custom_call.1} parent=1 // loop_body
      %s21 = ssub.s32 %s16, 1
      %s22 = ssub.s32 %s16, 2
      %s29 = sadd.s32 1, %s24
      %p30 = scmp.ge.s32.totalorder %s29, 1
      %s31 = scalar_select %p30, 0, %s29
      %s32 = sadd.s32 1, %s23
      %s33 = scalar_select %p30, %s32, %s23
      %p34 = scmp.ge.s32.totalorder %s33, 2
      %s35 = scalar_select %p34, 0, %s33
      %s36 = ssub.s32 %s23, %s35
      %p37 = scmp.eq.s32.totalorder %s36, 0
      %s39 = sadd.s32 %s38, 1
      %s40 = scalar_select %p37, %s38, %s39
      %p43 = pneg %p37
      %p44 = scmp.eq.s32.totalorder %s16, 1
      %p45 = por %p43, %p44
      %p46 = scmp.ne.s32.totalorder %s38, %s41
      %p47 = scmp.eq.s32.totalorder %s16, 0
      %p48 = por %p46, %p47
      %p49 = scmp.ne.s32.totalorder %s38, %s41
      %p50 = scmp.eq.s32.totalorder %s21, 1
      %p51 = por %p49, %p50
      %p52 = scmp.ne.s32.totalorder %s41, %s42
      %p53 = scmp.eq.s32.totalorder %s21, 0
      %p54 = por %p52, %p53
      %p55 = scmp.ne.s32.totalorder %s41, %s42
      %p56 = scmp.eq.s32.totalorder %s22, 1
      %p57 = por %p55, %p56
      %p59 = scmp.ne.s32.totalorder %s42, %s58
      %p60 = scmp.eq.s32.totalorder %s22, 0
      %p61 = por %p59, %p60
      %s62 = ssub.s32 %s24, %s31
      %p63 = scmp.eq.s32.totalorder %s62, 0
      %s65 = sadd.s32 %s64, 1
      %s66 = scalar_select %p63, %s64, %s65
      %p69 = pneg %p63
      %p70 = scmp.eq.s32.totalorder %s16, 1
      %p71 = por %p69, %p70
      %p72 = scmp.ne.s32.totalorder %s64, %s67
      %p73 = scmp.eq.s32.totalorder %s16, 0
      %p74 = por %p72, %p73
      %p75 = scmp.ne.s32.totalorder %s64, %s67
      %p76 = scmp.eq.s32.totalorder %s21, 1
      %p77 = por %p75, %p76
      %p78 = scmp.ne.s32.totalorder %s67, %s68
      %p79 = scmp.eq.s32.totalorder %s21, 0
      %p80 = por %p78, %p79
      %p81 = scmp.ne.s32.totalorder %s67, %s68
      %p82 = scmp.eq.s32.totalorder %s22, 1
      %p83 = por %p81, %p82
      %p85 = scmp.ne.s32.totalorder %s68, %s84
      %p86 = scmp.eq.s32.totalorder %s22, 0
      %p87 = por %p85, %p86
      %s88 = ssub.s32 %s24, %s31
      %p89 = scmp.eq.s32.totalorder %s88, 0
      %s91 = sadd.s32 %s90, 1
      %s92 = scalar_select %p89, %s90, %s91
      %p95 = pneg %p89
      %p96 = scmp.eq.s32.totalorder %s16, 1
      %p97 = por %p95, %p96
      %p98 = scmp.ne.s32.totalorder %s90, %s93
      %p99 = scmp.eq.s32.totalorder %s16, 0
      %p100 = por %p98, %p99
      %p101 = scmp.ne.s32.totalorder %s90, %s93
      %p102 = scmp.eq.s32.totalorder %s21, 1
      %p103 = por %p101, %p102
      %p104 = scmp.ne.s32.totalorder %s93, %s94
      %p105 = scmp.eq.s32.totalorder %s21, 0
      %p106 = por %p104, %p105
      %p107 = scmp.ne.s32.totalorder %s93, %s94
      %p108 = scmp.eq.s32.totalorder %s22, 1
      %p109 = por %p107, %p108
      %p111 = scmp.ne.s32.totalorder %s94, %s110
      %p112 = scmp.eq.s32.totalorder %s22, 0
      %p113 = por %p111, %p112
      %s114 = ssub.s32 %s23, %s35
      %s115 = ssub.s32 %s24, %s31
      %s116 = sor.u32 %s114, %s115
      %p117 = scmp.eq.s32.totalorder %s116, 0
      %s119 = sadd.s32 %s118, 1
      %s120 = scalar_select %p117, %s118, %s119
      %p123 = pneg %p117
      %p124 = scmp.eq.s32.totalorder %s16, 1
      %p125 = por %p123, %p124
      %p126 = scmp.ne.s32.totalorder %s118, %s121
      %p127 = scmp.eq.s32.totalorder %s16, 0
      %p128 = por %p126, %p127
      %p129 = scmp.ne.s32.totalorder %s118, %s121
      %p130 = scmp.eq.s32.totalorder %s21, 1
      %p131 = por %p129, %p130
      %p132 = scmp.ne.s32.totalorder %s121, %s122
      %p133 = scmp.eq.s32.totalorder %s21, 0
      %p134 = por %p132, %p133
      %p135 = scmp.ne.s32.totalorder %s121, %s122
      %p136 = scmp.eq.s32.totalorder %s22, 1
      %p137 = por %p135, %p136
      %p139 = scmp.ne.s32.totalorder %s122, %s138
      %p140 = scmp.eq.s32.totalorder %s22, 0
      %p141 = por %p139, %p140
      %p142 = scmp.le.s32.totalorder 1, %s16
      %p143 = scmp.lt.s32.totalorder %s16, 3
      %p144 = pnand %p142, %p143
      %p145 = pneg %p144
      // Predicated region
      $region9: #{tpu_custom_call.1} parent=5 // pred_check
        _
      $region10: #{tpu_custom_call.1} parent=5 // pred_check_branch
        %147 = sbr.rel (%p144) target = $region12
      $region11: #{tpu_custom_call.1} parent=5 // pred_region
        %s148 = ssub.s32 %s16, 1
        // Predicated region
        $region13: #{tpu_custom_call.1} parent=11 // pred_check
          %p149 = pneg %p80
        $region14: #{tpu_custom_call.1} parent=11 // pred_check_branch
          %151 = sbr.rel (%p149) target = $region16
        $region15: #{tpu_custom_call.1} parent=11 // pred_region
          %153 = vsyncadd [#allocation6], 0
          %s154 = smul.addr %s26, 8
          %s155 = scalar_lea.hbm %s1, %s154
          %s156 = sshll.u32 %s155, 4
          %s157 = int_to_ptr.hbm [resolvable:$true] %s156
          %s158 = sshll.u32 [#allocation5], 4
          %s159 = int_to_ptr.vmem [resolvable:$true] %s158
          %164 = dma.hbm_to_vmem [thread:$0]  %s157, 2048, %s159, [#allocation6], 128, 128, 8
        $region16: #{tpu_custom_call.1} parent=11 // pred_fallthru
          _
        // Predicated region
        $region17: #{tpu_custom_call.1} parent=11 // pred_check
          %p165 = pneg %p106
        $region18: #{tpu_custom_call.1} parent=11 // pred_check_branch
          %167 = sbr.rel (%p165) target = $region20
        $region19: #{tpu_custom_call.1} parent=11 // pred_region
          %p168 = scmp.lt.s32.totalorder %s26, 0
          %s169 = scalar_select %p168, %s26, 0
          %s170 = scalar_lea.vmem %s2, %s169
        $region20: #{tpu_custom_call.1} parent=11 // pred_fallthru
          _
      $region12: #{tpu_custom_call.1} parent=5 // pred_fallthru
        _
      %p171 = scmp.lt.s32.totalorder %s16, 2
      // Predicated region
      $region21: #{tpu_custom_call.1} parent=5 // pred_check
        %p172 = pneg %p171
      $region22: #{tpu_custom_call.1} parent=5 // pred_check_branch
        %174 = sbr.rel (%p172) target = $region24
      $region23: #{tpu_custom_call.1} parent=5 // pred_region
        // Predicated region
        $region25: #{tpu_custom_call.1} parent=23 // pred_check
          %p175 = pneg %p48
        $region26: #{tpu_custom_call.1} parent=23 // pred_check_branch
          %177 = sbr.rel (%p175) target = $region28
        $region27: #{tpu_custom_call.1} parent=23 // pred_region
          %s178 = sand.u32 %s38, 1
          %s179 = scalar_lea.sflag [#allocation3], %s178
          %s180 = sand.u32 %s38, 1
          %s181 = smul.addr %s180, 64
          %s182 = scalar_lea.vmem [#allocation2], %s181
          %s183 = smul.u32 8, %s23
          %185 = vsyncadd %s179, 0
          %s186 = smul.addr %s183, 8
          %s187 = scalar_lea.hbm %s0, %s186
          %s188 = sshll.u32 %s187, 4
          %s189 = int_to_ptr.hbm [resolvable:$true] %s188
          %s190 = sshll.u32 %s182, 4
          %s191 = int_to_ptr.vmem [resolvable:$true] %s190
          %196 = dma.hbm_to_vmem [thread:$0]  %s189, 1024, %s191, %s179, 128, 128, 8
        $region28: #{tpu_custom_call.1} parent=23 // pred_fallthru
          _
      $region24: #{tpu_custom_call.1} parent=5 // pred_fallthru
        _
      %p197 = scmp.le.s32.totalorder 1, %s16
      %p198 = scmp.lt.s32.totalorder %s16, 3
      %p199 = pnand %p197, %p198
      %p200 = pneg %p199
      // Predicated region
      $region29: #{tpu_custom_call.1} parent=5 // pred_check
        _
      $region30: #{tpu_custom_call.1} parent=5 // pred_check_branch
        %202 = sbr.rel (%p199) target = $region32
      $region31: #{tpu_custom_call.1} parent=5 // pred_region
        %s203 = ssub.s32 %s16, 1
        %s204 = sand.u32 %s41, 1
        %s205 = scalar_lea.sflag [#allocation3], %s204
        %s206 = sand.u32 %s41, 1
        %s207 = smul.addr %s206, 64
        %s208 = scalar_lea.vmem [#allocation2], %s207
        // Predicated region
        $region33: #{tpu_custom_call.1} parent=31 // pred_check
          %p209 = pneg %p54
        $region34: #{tpu_custom_call.1} parent=31 // pred_check_branch
          %211 = sbr.rel (%p209) target = $region36
        $region35: #{tpu_custom_call.1} parent=31 // pred_region
          %213 = dma.done %s205, 1024
        $region36: #{tpu_custom_call.1} parent=31 // pred_fallthru
          _
        // Predicated region
        $region37: #{tpu_custom_call.1} parent=31 // pred_check
          %p214 = pneg %p80
        $region38: #{tpu_custom_call.1} parent=31 // pred_check_branch
          %216 = sbr.rel (%p214) target = $region40
        $region39: #{tpu_custom_call.1} parent=31 // pred_region
          %218 = dma.done [#allocation6], 2048
        $region40: #{tpu_custom_call.1} parent=31 // pred_fallthru
          _
        %s219 = sand.u32 %s41, 1
        %s220 = scalar_lea.sflag [#allocation3], %s219
        %s221 = sand.u32 %s41, 1
        %s222 = smul.addr %s221, 64
        %s223 = scalar_lea.vmem [#allocation2], %s222
        %p224 = pneg %p54
        %p225 = pneg %p51
        %p226 = pneg %p80
        %p227 = pneg %p77
        %p228 = scmp.lt.s32.totalorder %s26, 0
        %s229 = scalar_select %p228, %s26, 0
        %s230 = scalar_lea.vmem %s2, %s229
        %p231 = pneg %p106
        %p232 = pneg %p103
        %p233 = pneg %p134
        %p234 = pneg %p131
        %s235 = sand.u32 %s121, 1
        %s236 = scalar_lea.sflag [#allocation4], %s235
        %s237 = sand.u32 %s121, 1
        %s238 = smul.addr %s237, 64
        %s239 = scalar_lea.vmem [#allocation7], %s238
        %s240 = smul.u32 8, %s25
        %p241 = scmp.lt.s32.totalorder %s26, 0
        %s242 = scalar_select %p241, %s26, 0
        %s243 = scalar_lea.vmem %s2, %s242
        %s244 = smul.u32 8, %s25
        %v245 = vld [vmem:[%s208] sm:$0xff]
        %v246 = vld [vmem:[%s208 + $0x8] sm:$0xff]
        %v247 = vld [vmem:[%s208 + $0x10] sm:$0xff]
        %v248 = vld [vmem:[%s208 + $0x18] sm:$0xff]
        %v249 = vld [vmem:[%s208 + $0x20] sm:$0xff]
        %v250 = vld [vmem:[%s208 + $0x28] sm:$0xff]
        %v251 = vld [vmem:[%s208 + $0x30] sm:$0xff]
        %v252 = vld [vmem:[%s208 + $0x38] sm:$0xff]
        %v253 = vld [vmem:[#allocation5] sm:$0xff]
        %v254 = vld [vmem:[#allocation5 + $0x8] sm:$0xff]
        %v255 = vld [vmem:[#allocation5 + $0x10] sm:$0xff]
        %v256 = vld [vmem:[#allocation5 + $0x18] sm:$0xff]
        %v257 = vld [vmem:[#allocation5 + $0x20] sm:$0xff]
        %v258 = vld [vmem:[#allocation5 + $0x28] sm:$0xff]
        %v259 = vld [vmem:[#allocation5 + $0x30] sm:$0xff]
        %v260 = vld [vmem:[#allocation5 + $0x38] sm:$0xff]
        %v261 = vld [vmem:[#allocation5 + $0x40] sm:$0xff]
        %v262 = vld [vmem:[#allocation5 + $0x48] sm:$0xff]
        %v263 = vld [vmem:[#allocation5 + $0x50] sm:$0xff]
        %v264 = vld [vmem:[#allocation5 + $0x58] sm:$0xff]
        %v265 = vld [vmem:[#allocation5 + $0x60] sm:$0xff]
        %v266 = vld [vmem:[#allocation5 + $0x68] sm:$0xff]
        %v267 = vld [vmem:[#allocation5 + $0x70] sm:$0xff]
        %v268 = vld [vmem:[#allocation5 + $0x78] sm:$0xff]
        %v269 = vld [vmem:[%s243] sm:$0x1]
        %v271 = vperm.slane %v269, 0
        %273 = vmatpush.msra.mxu0 %v268
        %274 = vmatpush.msra.mxu0 %v267
        %275 = vmatpush.msra.mxu0 %v266
        %276 = vmatpush.msra.mxu0 %v265
        %277 = vmatpush.msra.mxu0 %v264
        %278 = vmatpush.msra.mxu0 %v263
        %279 = vmatpush.msra.mxu0 %v262
        %280 = vmatpush.msra.mxu0 %v261
        %281 = vmatpush.msra.mxu0 %v260
        %282 = vmatpush.msra.mxu0 %v259
        %283 = vmatpush.msra.mxu0 %v258
        %284 = vmatpush.msra.mxu0 %v257
        %285 = vmatpush.msra.mxu0 %v256
        %286 = vmatpush.msra.mxu0 %v255
        %287 = vmatpush.msra.mxu0 %v254
        %288 = vmatpush.msra.mxu0 %v253
        %289 = vmatmul.f32.gmra.mxu0 %v245
        %v290 = vpop.f32.mrf.mxu0
        %v291 = vadd.f32 %v271, %v290
        %292 = vmatmul.f32.gmra.mxu0 %v246
        %v293 = vpop.f32.mrf.mxu0
        %v294 = vadd.f32 %v271, %v293
        %295 = vmatmul.f32.gmra.mxu0 %v247
        %v296 = vpop.f32.mrf.mxu0
        %v297 = vadd.f32 %v271, %v296
        %298 = vmatmul.f32.gmra.mxu0 %v248
        %v299 = vpop.f32.mrf.mxu0
        %v300 = vadd.f32 %v271, %v299
        %301 = vmatmul.f32.gmra.mxu0 %v249
        %v302 = vpop.f32.mrf.mxu0
        %v303 = vadd.f32 %v271, %v302
        %304 = vmatmul.f32.gmra.mxu0 %v250
        %v305 = vpop.f32.mrf.mxu0
        %v306 = vadd.f32 %v271, %v305
        %307 = vmatmul.f32.gmra.mxu0 %v251
        %v308 = vpop.f32.mrf.mxu0
        %v309 = vadd.f32 %v271, %v308
        %310 = vmatmul.f32.gmra.mxu0 %v252
        %v311 = vpop.f32.mrf.mxu0
        %v312 = vadd.f32 %v271, %v311
        %313 = vdwg.mxu0
        %314 = vst [vmem:[%s239] sm:$0xff] %v291
        %315 = vst [vmem:[%s239 + $0x8] sm:$0xff] %v294
        %316 = vst [vmem:[%s239 + $0x10] sm:$0xff] %v297
        %317 = vst [vmem:[%s239 + $0x18] sm:$0xff] %v300
        %318 = vst [vmem:[%s239 + $0x20] sm:$0xff] %v303
        %319 = vst [vmem:[%s239 + $0x28] sm:$0xff] %v306
        %320 = vst [vmem:[%s239 + $0x30] sm:$0xff] %v309
        %321 = vst [vmem:[%s239 + $0x38] sm:$0xff] %v312
        %s322 = sand.u32 %s121, 1
        %s323 = scalar_lea.sflag [#allocation4], %s322
        %s324 = sand.u32 %s121, 1
        %s325 = smul.addr %s324, 64
        %s326 = scalar_lea.vmem [#allocation7], %s325
        // Predicated region
        $region41: #{tpu_custom_call.1} parent=31 // pred_check
          %p327 = pneg %p131
        $region42: #{tpu_custom_call.1} parent=31 // pred_check_branch
          %329 = sbr.rel (%p327) target = $region44
        $region43: #{tpu_custom_call.1} parent=31 // pred_region
          %s330 = smul.u32 8, %s25
          %332 = vsyncadd %s323, 0
          %s333 = sadd.s32 %s26, %s330
          %s334 = smul.addr %s333, 8
          %s335 = scalar_lea.hbm %s3, %s334
          %s336 = sshll.u32 %s326, 4
          %s337 = int_to_ptr.vmem [resolvable:$true] %s336
          %s338 = sshll.u32 %s335, 4
          %s339 = int_to_ptr.hbm [resolvable:$true] %s338
          %344 = dma.vmem_to_hbm [thread:$0]  %s337, 1024, %s339, %s323, 128, 128, 8
        $region44: #{tpu_custom_call.1} parent=31 // pred_fallthru
          _
      $region32: #{tpu_custom_call.1} parent=5 // pred_fallthru
        _
      %p345 = scmp.le.s32.totalorder 2, %s16
      // Predicated region
      $region45: #{tpu_custom_call.1} parent=5 // pred_check
        %p346 = pneg %p345
      $region46: #{tpu_custom_call.1} parent=5 // pred_check_branch
        %348 = sbr.rel (%p346) target = $region48
      $region47: #{tpu_custom_call.1} parent=5 // pred_region
        %s349 = ssub.s32 %s16, 2
        // Predicated region
        $region49: #{tpu_custom_call.1} parent=47 // pred_check
          %p350 = pneg %p137
        $region50: #{tpu_custom_call.1} parent=47 // pred_check_branch
          %352 = sbr.rel (%p350) target = $region52
        $region51: #{tpu_custom_call.1} parent=47 // pred_region
          %s353 = sand.u32 %s122, 1
          %s354 = scalar_lea.sflag [#allocation4], %s353
          %s355 = sand.u32 %s122, 1
          %s356 = smul.addr %s355, 64
          %s357 = scalar_lea.vmem [#allocation7], %s356
          %359 = dma.done %s354, 1024
        $region52: #{tpu_custom_call.1} parent=47 // pred_fallthru
          _
      $region48: #{tpu_custom_call.1} parent=5 // pred_fallthru
        _
    $region6: #{tpu_custom_call.1} parent=1 // loop_footer
      %s20 = sadd.s32 1, %s16
    $region7: #{tpu_custom_call.1} parent=1 // loop_footer_branch
      %15 = sbr.rel target = $region3
    $region8: #{tpu_custom_call.1} parent=1 // loop_exit
      _
    %360 = vsyncpa [#allocation3], 1
    %s361 = scalar_lea.sflag [#allocation3], 1
    %362 = vsyncpa %s361, 1
    %363 = vsyncpa [#allocation6], 1
    %364 = vsyncpa [#allocation4], 1
    %s365 = scalar_lea.sflag [#allocation4], 1
    %366 = vsyncpa %s365, 1

</llo_original>
